<compile_context>
chip_gen: v6e
topology: v6e:2x2x1
jax: 0.10.0
libtpu: 0.0.40
codegen_flags: <defaults>
</compile_context>

<pallas_src>
import functools

import jax
import jax.numpy as jnp
from jax.experimental import pallas as pl
from jax.experimental.pallas import tpu as pltpu


def _round_up(x: int, m: int) -> int:
    return ((x + m - 1) // m) * m


def _cdiv(a: int, b: int) -> int:
    return (a + b - 1) // b


def mlp_kernel(x_ref, w1_ref, b1_ref, w2_ref, b2_ref, o_ref):
    # Hidden layer: (TB, I) bf16 @ (I, H) bf16 -> f32 accumulate; bias + ReLU in f32.
    h = jnp.dot(x_ref[...], w1_ref[...], preferred_element_type=jnp.float32)
    h = jnp.maximum(h + b1_ref[...], 0.0)

    # Output layer: cast hidden back to bf16 for the MXU, accumulate in f32.
    # O_pad == 128, so this is one full-width MXU pass and the store below is
    # a lane-dense unmasked vst (bf16, halving the writeback bytes).
    y = jnp.dot(h.astype(jnp.bfloat16), w2_ref[...],
                preferred_element_type=jnp.float32)
    o_ref[...] = jax.nn.sigmoid(y + b2_ref[...]).astype(o_ref.dtype)


@functools.partial(jax.jit, static_argnames=("out_features", "block_batch"))
def mlp_forward(x, w1p, b1p, w2p, b2p, *, out_features, block_batch=2048):
    """x: (B, I) f32.  w1p: (I, H) bf16; b1p: (1, H) f32; w2p: (H, O_pad) bf16;
    b2p: (1, O_pad) f32 — produced once by prepare_mlp_params."""
    B, I = x.shape
    I2, H = w1p.shape
    H2, O_pad = w2p.shape
    assert I == I2 and H == H2
    assert b1p.shape == (1, H) and b2p.shape == (1, O_pad)
    assert O_pad % 128 == 0 and out_features <= O_pad

    # Tile choice: at most one sublane group of tail overshoot, and >= 2 grid
    # steps for moderately large batches so v7x's second TensorCore gets work.
    n_tiles = _cdiv(B, block_batch)
    if B > 256 and n_tiles < 2:
        n_tiles = 2
    TB = _round_up(_cdiv(B, n_tiles), 16)  # 16: bf16 sublane packing
    B_pad = n_tiles * TB

    # Cast the activation to bf16 (and batch-pad only if needed); both fuse
    # under this jit — no standalone 128-column pad pass over x anymore.
    xb = x.astype(jnp.bfloat16)
    if B_pad != B:
        xb = jnp.pad(xb, ((0, B_pad - B), (0, 0)))

    out_padded = pl.pallas_call(
        mlp_kernel,
        out_shape=jax.ShapeDtypeStruct((B_pad, O_pad), jnp.bfloat16),
        grid=(n_tiles,),
        in_specs=[
            # Batch-tiled activation, unpadded feature dim (= full array dim).
            pl.BlockSpec((TB, I), lambda i: (i, 0)),
            # Weights / biases: same block every grid step -> VMEM-resident.
            pl.BlockSpec((I, H), lambda i: (0, 0)),
            pl.BlockSpec((1, H), lambda i: (0, 0)),
            pl.BlockSpec((H, O_pad), lambda i: (0, 0)),
            pl.BlockSpec((1, O_pad), lambda i: (0, 0)),
        ],
        out_specs=pl.BlockSpec((TB, O_pad), lambda i: (i, 0)),
        compiler_params=pltpu.CompilerParams(
            dimension_semantics=("parallel",),  # shard batch tiles across TCs (v7x)
        ),
    )(xb, w1p, b1p, w2p, b2p)

    # Slice out the real rows / column(s); fused under jit with the kernel.
    return out_padded[:B, :out_features].astype(jnp.float32)


def prepare_mlp_params(w1_t, b1, w2_t, b2):
    """One-time parameter prep (hoisted out of the forward pass):
    cast weights to bf16 for the MXU and zero-pad the output dim to 128 lanes
    so the kernel's final store is lane-dense.  Biases stay f32 (f32 epilogue)."""
    I, H = w1_t.shape
    H2, O = w2_t.shape
    assert H == H2 and b1.shape == (1, H) and b2.shape == (1, O)
    O_pad = _round_up(O, 128)
    w1p = w1_t.astype(jnp.bfloat16)
    b1p = b1.astype(jnp.float32)
    w2p = jnp.zeros((H, O_pad), jnp.bfloat16).at[:, :O].set(w2_t.astype(jnp.bfloat16))
    b2p = jnp.zeros((1, O_pad), jnp.float32).at[:, :O].set(b2.astype(jnp.float32))
    return w1p, b1p, w2p, b2p


def init_mlp_params(key, input_size, hidden_size, output_size):
    """Deterministic init mimicking nn.Linear's default U(-1/sqrt(fan_in), 1/sqrt(fan_in))."""
    k1, k2, k3, k4 = jax.random.split(key, 4)
    bound1 = 1.0 / jnp.sqrt(jnp.float32(input_size))
    bound2 = 1.0 / jnp.sqrt(jnp.float32(hidden_size))
    # Stored pre-transposed: (in, out).
    w1_t = jax.random.uniform(k1, (input_size, hidden_size), jnp.float32, -bound1, bound1)
    b1 = jax.random.uniform(k2, (1, hidden_size), jnp.float32, -bound1, bound1)
    w2_t = jax.random.uniform(k3, (hidden_size, output_size), jnp.float32, -bound2, bound2)
    b2 = jax.random.uniform(k4, (1, output_size), jnp.float32, -bound2, bound2)
    return w1_t, b1, w2_t, b2


if __name__ == "__main__":
    # Heart-disease-like shapes: 13 features, hidden=32, binary output (1 logit).
    input_size, hidden_size, output_size = 13, 32, 1

    key = jax.random.PRNGKey(0)
    kx, kp = jax.random.split(key)
    w1_t, b1, w2_t, b2 = init_mlp_params(kp, input_size, hidden_size, output_size)
    params = prepare_mlp_params(w1_t, b1, w2_t, b2)  # pad/cast once, not per call

    # Small batch plus a batch that exercises the multi-tile (2 grid steps,
    # v7x-style split) and tail-padding path.
    for batch in (8, 300):
        x = jax.random.normal(jax.random.fold_in(kx, batch),
                              (batch, input_size), jnp.float32)
        out = mlp_forward(x, *params, out_features=output_size)
        out = jax.block_until_ready(out)

        # Pure-JAX f32 reference of the same forward pass (bf16 kernel inputs ->
        # relaxed tolerance).
        ref = jax.nn.sigmoid(jnp.maximum(x @ w1_t + b1, 0.0) @ w2_t + b2)
        assert out.shape == (batch, output_size)
        assert jnp.allclose(out, ref, atol=2e-2, rtol=0.0), f"mismatch vs reference at B={batch}"

    print("KERNEL_OK")
</pallas_src>

<mosaic_0001>
module attributes {stable_mosaic.version = 11 : i64} {
  func.func @mlp_kernel(%arg0: i32, %arg1: memref<16x13xbf16, #tpu.memory_space<vmem>>, %arg2: memref<13x32xbf16, #tpu.memory_space<vmem>>, %arg3: memref<1x32xf32, #tpu.memory_space<vmem>>, %arg4: memref<32x128xbf16, #tpu.memory_space<vmem>>, %arg5: memref<1x128xf32, #tpu.memory_space<vmem>>, %arg6: memref<16x128xbf16, #tpu.memory_space<vmem>>) attributes {dimension_semantics = [#tpu.dimension_semantics<parallel>], iteration_bounds = array<i64: 1>, scalar_prefetch = 0 : i64, scratch_operands = 0 : i64, tpu.core_type = #tpu.core_type<tc>, window_params = [{transform_indices = @transform_0, window_bounds = array<i64: 16, 13>}, {pipeline_mode = #tpu.pipeline_mode<synchronous>, transform_indices = @transform_1, window_bounds = array<i64: 13, 32>}, {pipeline_mode = #tpu.pipeline_mode<synchronous>, transform_indices = @transform_2, window_bounds = array<i64: 1, 32>}, {pipeline_mode = #tpu.pipeline_mode<synchronous>, transform_indices = @transform_3, window_bounds = array<i64: 32, 128>}, {pipeline_mode = #tpu.pipeline_mode<synchronous>, transform_indices = @transform_4, window_bounds = array<i64: 1, 128>}, {transform_indices = @transform_5, window_bounds = array<i64: 16, 128>}]} {
    %c0 = arith.constant 0 : index
    %c0_0 = arith.constant 0 : index
    %0 = vector.load %arg1[%c0, %c0_0] : memref<16x13xbf16, #tpu.memory_space<vmem>>, vector<16x13xbf16>
    %c0_1 = arith.constant 0 : index
    %c0_2 = arith.constant 0 : index
    %1 = vector.load %arg2[%c0_1, %c0_2] : memref<13x32xbf16, #tpu.memory_space<vmem>>, vector<13x32xbf16>
    %cst = arith.constant dense<0.000000e+00> : vector<16x32xf32>
    %2 = tpu.matmul %0, %1, %cst {dimension_numbers = #tpu.dot_dimension_numbers<[1], [0], [0], [1], [0, 0, 1, 1], [], []>} : vector<16x13xbf16>, vector<13x32xbf16>, vector<16x32xf32> -> vector<16x32xf32>
    %c0_3 = arith.constant 0 : index
    %c0_4 = arith.constant 0 : index
    %3 = vector.load %arg3[%c0_3, %c0_4] : memref<1x32xf32, #tpu.memory_space<vmem>>, vector<1x32xf32>
    %4 = vector.broadcast %3 : vector<1x32xf32> to vector<16x32xf32>
    %5 = arith.addf %2, %4 : vector<16x32xf32>
    %cst_5 = arith.constant 0.000000e+00 : f32
    %6 = vector.broadcast %cst_5 : f32 to vector<16x32xf32>
    %7 = arith.maximumf %5, %6 : vector<16x32xf32>
    %8 = arith.truncf %7 : vector<16x32xf32> to vector<16x32xbf16>
    %c0_6 = arith.constant 0 : index
    %c0_7 = arith.constant 0 : index
    %9 = vector.load %arg4[%c0_6, %c0_7] : memref<32x128xbf16, #tpu.memory_space<vmem>>, vector<32x128xbf16>
    %cst_8 = arith.constant dense<0.000000e+00> : vector<16x128xf32>
    %10 = tpu.matmul %8, %9, %cst_8 {dimension_numbers = #tpu.dot_dimension_numbers<[1], [0], [0], [1], [0, 0, 1, 1], [], []>} : vector<16x32xbf16>, vector<32x128xbf16>, vector<16x128xf32> -> vector<16x128xf32>
    %c0_9 = arith.constant 0 : index
    %c0_10 = arith.constant 0 : index
    %11 = vector.load %arg5[%c0_9, %c0_10] : memref<1x128xf32, #tpu.memory_space<vmem>>, vector<1x128xf32>
    %12 = vector.broadcast %11 : vector<1x128xf32> to vector<16x128xf32>
    %13 = arith.addf %10, %12 : vector<16x128xf32>
    %14 = arith.negf %13 : vector<16x128xf32>
    %15 = math.exp %14 : vector<16x128xf32>
    %cst_11 = arith.constant 1.000000e+00 : f32
    %16 = vector.broadcast %cst_11 : f32 to vector<16x128xf32>
    %17 = arith.addf %16, %15 : vector<16x128xf32>
    %18 = arith.divf %16, %17 : vector<16x128xf32>
    %19 = arith.truncf %18 : vector<16x128xf32> to vector<16x128xbf16>
    %c0_12 = arith.constant 0 : index
    %c0_13 = arith.constant 0 : index
    %20 = vector.load %arg6[%c0_12, %c0_13] : memref<16x128xbf16, #tpu.memory_space<vmem>>, vector<16x128xbf16>
    tpu.vector_store %arg6[%c0_12, %c0_13], %19 {strides = array<i32>} : memref<16x128xbf16, #tpu.memory_space<vmem>>, vector<16x128xbf16>,
    return
  }
  func.func @transform_0(%arg0: i32) -> (i32, i32) {
    %c0_i32 = arith.constant 0 : i32
    %c0_i32_0 = arith.constant 0 : i32
    return %arg0, %c0_i32 : i32, i32
  }
  func.func @transform_1(%arg0: i32) -> (i32, i32) {
    %c0_i32 = arith.constant 0 : i32
    %c0_i32_0 = arith.constant 0 : i32
    %c0_i32_1 = arith.constant 0 : i32
    return %c0_i32, %c0_i32_0 : i32, i32
  }
  func.func @transform_2(%arg0: i32) -> (i32, i32) {
    %c0_i32 = arith.constant 0 : i32
    %c0_i32_0 = arith.constant 0 : i32
    %c0_i32_1 = arith.constant 0 : i32
    return %c0_i32, %c0_i32_0 : i32, i32
  }
  func.func @transform_3(%arg0: i32) -> (i32, i32) {
    %c0_i32 = arith.constant 0 : i32
    %c0_i32_0 = arith.constant 0 : i32
    %c0_i32_1 = arith.constant 0 : i32
    return %c0_i32, %c0_i32_0 : i32, i32
  }
  func.func @transform_4(%arg0: i32) -> (i32, i32) {
    %c0_i32 = arith.constant 0 : i32
    %c0_i32_0 = arith.constant 0 : i32
    %c0_i32_1 = arith.constant 0 : i32
    return %c0_i32, %c0_i32_0 : i32, i32
  }
  func.func @transform_5(%arg0: i32) -> (i32, i32) {
    %c0_i32 = arith.constant 0 : i32
    %c0_i32_0 = arith.constant 0 : i32
    return %arg0, %c0_i32 : i32, i32
  }
}

</mosaic_0001>

<llo_original>
// kernel: mlp_forward.1
$region0: #{mlp_forward.1}
  #allocation0 [shape = 'u32[]', space=smem, size = 0x4, offset = 0x4, fixed_abs, tag = 'smem constant byte address 0x4 - core index']
  #allocation1 [shape = 'u32[144,128]{1,0:T(1,128)}', space=vmem, size = 0x12000, scoped, tag = 'internal scratch']
  %s0 = inlined_call_operand.vmem [shape: bf16[16,13], index: 0, kind: input, shape index: {}]
  %s1 = inlined_call_operand.vmem [shape: bf16[13,32], index: 1, kind: input, shape index: {}]
  %s2 = inlined_call_operand.vmem [shape: f32[1,32], index: 2, kind: input, shape index: {}]
  %s3 = inlined_call_operand.vmem [shape: bf16[32,128], index: 3, kind: input, shape index: {}]
  %s4 = inlined_call_operand.vmem [shape: f32[1,128], index: 4, kind: input, shape index: {}]
  %s5 = inlined_call_operand.vmem [shape: bf16[16,128], index: 5, kind: output, shape index: {}]
  %s6 = sld [smem:[#allocation0]]
  $region30: #{mlp_forward.1} parent=0
    _
  %s8 = ssub.s32 1, %s6
  %s9 = scalar_select 0, %s8, %s6
  // Predicated region
  $region2: #{mlp_forward.1} parent=0 // pred_check
    _
  $region3: #{mlp_forward.1} parent=0 // pred_check_branch
    %11 = sbr.rel (0) target = $region5
  $region4: #{mlp_forward.1} parent=0 // pred_region
    _
  $region5: #{mlp_forward.1} parent=0 // pred_fallthru
    _
  // Predicated region
  $region6: #{mlp_forward.1} parent=0 // pred_check
    _
  $region7: #{mlp_forward.1} parent=0 // pred_check_branch
    %13 = sbr.rel (0) target = $region9
  $region8: #{mlp_forward.1} parent=0 // pred_region
    _
  $region9: #{mlp_forward.1} parent=0 // pred_fallthru
    _
  // Predicated region
  $region10: #{mlp_forward.1} parent=0 // pred_check
    _
  $region11: #{mlp_forward.1} parent=0 // pred_check_branch
    %15 = sbr.rel (0) target = $region13
  $region12: #{mlp_forward.1} parent=0 // pred_region
    _
  $region13: #{mlp_forward.1} parent=0 // pred_fallthru
    _
  // Predicated region
  $region14: #{mlp_forward.1} parent=0 // pred_check
    _
  $region15: #{mlp_forward.1} parent=0 // pred_check_branch
    %17 = sbr.rel (0) target = $region17
  $region16: #{mlp_forward.1} parent=0 // pred_region
    _
  $region17: #{mlp_forward.1} parent=0 // pred_fallthru
    _
  // Predicated region
  $region18: #{mlp_forward.1} parent=0 // pred_check
    _
  $region19: #{mlp_forward.1} parent=0 // pred_check_branch
    %19 = sbr.rel (0) target = $region21
  $region20: #{mlp_forward.1} parent=0 // pred_region
    _
  $region21: #{mlp_forward.1} parent=0 // pred_fallthru
    _
  %v21 = vld [vmem:[%s0] sm:$0xf]
  %v22 = vld [vmem:[%s0 + $0x4] sm:$0xf]
  %v23 = vld [vmem:[%s1] sm:$0xf]
  %v24 = vld [vmem:[%s1 + $0x4] sm:$0x7]
  %v25 = vld [vmem:[%s2] sm:$0x1]
  %v27 = vlaneseq
  %v28 = vshrl.u32 %v27, 7
  %v29 = vsub.s32 0, %v28
  %v30 = vrot.slane %v25, %v29
  %v34 = vunpack.c.l.b16 %v21
  %v35 = vunpack.c.l.b16 %v22
  %v36 = vpack.c.b16 %v35, %v34
  %v39 = vunpack.c.l.b16 %v23
  %v40 = vunpack.c.l.b16 %v24
  %v41 = vpack.c.b16 %v40, %v39
  %vm42 = vcmask 105472
  %v44 = vsel %vm42, %v36, 0
  %vm46 = vcmask 1045504
  %vm47 = vcmask 1046528
  %v48 = vsel %vm46, 4294967295, 65535
  %v49 = vsel %vm47, %v48, 0
  %v51 = vand.u32 %v41, %v49
  %53 = vmatprep.subr.bf16.mxu0 0
  %54 = vmatpush1.bf16.msra.mxu0 0
  %55 = vmatprep.subr.bf16.mxu0 0
  %56 = vmatpush1.bf16.msra.mxu0 0
  %57 = vmatprep.subr.bf16.mxu0 0
  %58 = vmatpush1.bf16.msra.mxu0 0
  %59 = vmatprep.subr.bf16.mxu0 0
  %60 = vmatpush1.bf16.msra.mxu0 0
  %61 = vmatprep.subr.bf16.mxu0 0
  %62 = vmatpush1.bf16.msra.mxu0 0
  %63 = vmatprep.subr.bf16.mxu0 0
  %64 = vmatpush1.bf16.msra.mxu0 0
  %65 = vmatprep.subr.bf16.mxu0 0
  %66 = vmatpush1.bf16.msra.mxu0 0
  %67 = vmatprep.subr.bf16.mxu0 0
  %68 = vmatpush1.bf16.msra.mxu0 %v51
  %69 = vmatprep.subr.bf16.mxu0 0
  %70 = vmatpush2.bf16.msra.mxu0 0
  %71 = vmatprep.subr.bf16.mxu0 0
  %72 = vmatpush2.bf16.msra.mxu0 0
  %73 = vmatprep.subr.bf16.mxu0 0
  %74 = vmatpush2.bf16.msra.mxu0 0
  %75 = vmatprep.subr.bf16.mxu0 0
  %76 = vmatpush2.bf16.msra.mxu0 0
  %77 = vmatprep.subr.bf16.mxu0 0
  %78 = vmatpush2.bf16.msra.mxu0 0
  %79 = vmatprep.subr.bf16.mxu0 0
  %80 = vmatpush2.bf16.msra.mxu0 0
  %81 = vmatprep.subr.bf16.mxu0 0
  %82 = vmatpush2.bf16.msra.mxu0 0
  %83 = vmatprep.subr.bf16.mxu0 0
  %84 = vmatpush2.bf16.msra.mxu0 0
  %85 = vmatprep.mubr.bf16.mxu0 0
  %86 = vmatmul.mubr.bf16.gmra.mxu0 %v44
  %v87 = vpop.f32.mrf.mxu0
  %v88 = vadd.f32 %v30, %v87
  %v89 = vpop.f32.mrf.mxu0
  %v90 = vpop.f32.mrf.mxu0
  %v91 = vadd.f32 %v30, %v90
  %v92 = vpop.f32.mrf.mxu0
  %93 = vdwg.mxu0
  %v94 = vmax.f32 %v88, 0.0
  %v95 = vmax.f32 %v91, 0.0
  %v96 = vpack.c.bf16 %v95, %v94
  %v97 = vld [vmem:[%s3] sm:$0xf]
  %v98 = vld [vmem:[%s3 + $0x4] sm:$0xf]
  %v99 = vld [vmem:[%s3 + $0x8] sm:$0xf]
  %v100 = vld [vmem:[%s3 + $0xc] sm:$0xf]
  %v101 = vld [vmem:[%s4] sm:$0x1]
  %v103 = vlaneseq
  %v104 = vshrl.u32 %v103, 7
  %v105 = vsub.s32 0, %v104
  %v106 = vrot.slane %v101, %v105
  %v112 = vunpack.c.l.b16 %v97
  %v113 = vunpack.c.l.b16 %v98
  %v114 = vunpack.c.l.b16 %v99
  %v115 = vunpack.c.l.b16 %v100
  %v116 = vpack.c.b16 %v113, %v112
  %v117 = vpack.c.b16 %v115, %v114
  %vm120 = vcmask 261120
  %v122 = vsel %vm120, %v96, 0
  %124 = vmatprep.subr.bf16.mxu0 0
  %125 = vmatpush1.bf16.msra.mxu0 0
  %126 = vmatprep.subr.bf16.mxu0 0
  %127 = vmatpush1.bf16.msra.mxu0 0
  %128 = vmatprep.subr.bf16.mxu0 0
  %129 = vmatpush1.bf16.msra.mxu0 0
  %130 = vmatprep.subr.bf16.mxu0 0
  %131 = vmatpush1.bf16.msra.mxu0 0
  %132 = vmatprep.subr.bf16.mxu0 0
  %133 = vmatpush1.bf16.msra.mxu0 0
  %134 = vmatprep.subr.bf16.mxu0 0
  %135 = vmatpush1.bf16.msra.mxu0 0
  %136 = vmatprep.subr.bf16.mxu0 0
  %137 = vmatpush1.bf16.msra.mxu0 %v117
  %138 = vmatprep.subr.bf16.mxu0 0
  %139 = vmatpush1.bf16.msra.mxu0 %v116
  %140 = vmatprep.subr.bf16.mxu0 0
  %141 = vmatpush2.bf16.msra.mxu0 0
  %142 = vmatprep.subr.bf16.mxu0 0
  %143 = vmatpush2.bf16.msra.mxu0 0
  %144 = vmatprep.subr.bf16.mxu0 0
  %145 = vmatpush2.bf16.msra.mxu0 0
  %146 = vmatprep.subr.bf16.mxu0 0
  %147 = vmatpush2.bf16.msra.mxu0 0
  %148 = vmatprep.subr.bf16.mxu0 0
  %149 = vmatpush2.bf16.msra.mxu0 0
  %150 = vmatprep.subr.bf16.mxu0 0
  %151 = vmatpush2.bf16.msra.mxu0 0
  %152 = vmatprep.subr.bf16.mxu0 0
  %153 = vmatpush2.bf16.msra.mxu0 0
  %154 = vmatprep.subr.bf16.mxu0 0
  %155 = vmatpush2.bf16.msra.mxu0 0
  %156 = vmatprep.mubr.bf16.mxu0 0
  %157 = vmatmul.mubr.bf16.gmra.mxu0 %v122
  %v158 = vpop.f32.mrf.mxu0
  %v159 = vadd.f32 %v106, %v158
  %v160 = vpop.f32.mrf.mxu0
  %v161 = vpop.f32.mrf.mxu0
  %v162 = vadd.f32 %v106, %v161
  %v163 = vpop.f32.mrf.mxu0
  %164 = vdwg.mxu0
  %v165 = vxor.u32 %v159, 2147483648
  %v166 = vxor.u32 %v162, 2147483648
  %v167 = vmul.f32 %v165, 1.442695
  %v168 = vpow.pop %v167
  %v169 = vmul.f32 %v166, 1.442695
  %v170 = vpow.pop %v169
  %v171 = vadd.f32 %v168, 1.0
  %v172 = vadd.f32 %v170, 1.0
  %v173 = vrcp.pop %v171
  %v174 = vmul.f32 1.0, %v173
  %v175 = vrcp.pop %v172
  %v176 = vmul.f32 1.0, %v175
  %v177 = vpack.c.bf16 %v176, %v174
  %v179 = vunpack.c.l.b16 %v177
  %v180 = vunpack.c.h.b16 %v177
  %v181 = vpack.c.b16 %v179, %v179
  %v182 = vpack.c.b16 %v180, %v180
  %185 = vst [vmem:[%s5] sm:$0xf] %v181
  %186 = vst [vmem:[%s5 + $0x4] sm:$0xf] %v182
  // Predicated region
  $region22: #{mlp_forward.1} parent=0 // pred_check
    _
  $region23: #{mlp_forward.1} parent=0 // pred_check_branch
    %188 = sbr.rel (0) target = $region25
  $region24: #{mlp_forward.1} parent=0 // pred_region
    _
  $region25: #{mlp_forward.1} parent=0 // pred_fallthru
    _
  // Predicated region
  $region26: #{mlp_forward.1} parent=0 // pred_check
    _
  $region27: #{mlp_forward.1} parent=0 // pred_check_branch
    %190 = sbr.rel (0) target = $region29
  $region28: #{mlp_forward.1} parent=0 // pred_region
    _
  $region29: #{mlp_forward.1} parent=0 // pred_fallthru
    _

</llo_original>
